<compile_context>
chip_gen: v5e
topology: v5e:2x2
jax: 0.10.0
libtpu: 0.0.40
codegen_flags: <defaults>
</compile_context>

<pallas_src>
import jax
import jax.numpy as jnp
from jax.experimental import pallas as pl
from jax.experimental.pallas import tpu as pltpu


def _round_up(x, m):
    return ((x + m - 1) // m) * m


# ----------------------------- Pallas kernels ------------------------------

def _conv_stats_kernel(a_ref, w_ref, y_ref, stats_ref):
    """One M-tile of the im2col matmul + fused per-channel sum / sum-of-squares.

    a_ref:     (tm, K)   bf16 im2col rows
    w_ref:     (K, Cp)   bf16 flattened weights (Cp = Cout padded to 128)
    y_ref:     (tm, Cp)  f32 conv output tile
    stats_ref: (8, Cp)   f32; row 0 = sum over tile rows, row 1 = sum of squares
    """
    y = jnp.dot(a_ref[...], w_ref[...], preferred_element_type=jnp.float32)
    y_ref[...] = y
    s1 = jnp.sum(y, axis=0, keepdims=True)        # (1, Cp)
    s2 = jnp.sum(y * y, axis=0, keepdims=True)    # (1, Cp)
    row = jax.lax.broadcasted_iota(jnp.int32, stats_ref.shape, 0)
    stats_ref[...] = jnp.where(row == 0, s1, jnp.where(row == 1, s2, 0.0))


def _scale_shift_relu_kernel(y_ref, scale_ref, shift_ref, o_ref):
    """Per-channel folded-BN affine + ReLU on one (tm, Cp) tile."""
    o_ref[...] = jnp.maximum(y_ref[...] * scale_ref[...] + shift_ref[...], 0.0)


# ------------------------------ JAX glue -----------------------------------

def _im2col(x, KH, KW, stride, padding, dilation):
    """x: (N, C, H, W) -> A: (N*OH*OW, C*KH*KW) (columns Cin-major, then kh, kw)."""
    N, C, H, W = x.shape
    xp = jnp.pad(x, ((0, 0), (0, 0), (padding, padding), (padding, padding)))
    OH = (H + 2 * padding - dilation * (KH - 1) - 1) // stride + 1
    OW = (W + 2 * padding - dilation * (KW - 1) - 1) // stride + 1
    cols = []
    for kh in range(KH):
        for kw in range(KW):
            h0 = kh * dilation
            w0 = kw * dilation
            patch = xp[:, :,
                       h0:h0 + (OH - 1) * stride + 1:stride,
                       w0:w0 + (OW - 1) * stride + 1:stride]   # (N, C, OH, OW)
            cols.append(patch)
    cols = jnp.stack(cols, axis=0).reshape(KH, KW, N, C, OH, OW)
    A = cols.transpose(2, 4, 5, 3, 0, 1).reshape(N * OH * OW, C * KH * KW)
    return A, OH, OW


def conv2d_bn_relu(x, weight, bias, gamma, beta, *, stride, padding, dilation,
                   eps=1e-5, tm=512):
    """Forward of Conv2dBatchNormReLU (BatchNorm in training mode, batch stats).

    x: (N, Cin, H, W) NCHW; weight: (Cout, Cin, KH, KW); bias/gamma/beta: (Cout,)
    returns (N, Cout, OH, OW) NCHW.
    """
    del bias  # exactly cancelled by training-mode BN mean subtraction
    N, Cin, H, W = x.shape
    Cout, _, KH, KW = weight.shape

    # bf16 operands for the MXU (f32 accumulation inside the kernel).
    A, OH, OW = _im2col(x.astype(jnp.bfloat16), KH, KW, stride, padding, dilation)
    M, K = A.shape

    # M tiling: big tiles amortize per-step overhead; multiple of 16 for bf16.
    tm = max(16, min(tm, _round_up(M, 16)))
    Mp = _round_up(M, tm)
    if Mp != M:
        A = jnp.pad(A, ((0, Mp - M), (0, 0)))          # zero rows -> zero conv rows
    nb = Mp // tm

    # Lane-dense output channels.
    Cp = _round_up(Cout, 128)
    Wm = jnp.pad(weight.reshape(Cout, Cin * KH * KW),
                 ((0, Cp - Cout), (0, 0))).T.astype(jnp.bfloat16)   # (K, Cp)

    # --- Kernel 1: conv matmul + fused per-tile channel stats ---------------
    y, stats = pl.pallas_call(
        _conv_stats_kernel,
        out_shape=(jax.ShapeDtypeStruct((Mp, Cp), jnp.float32),
                   jax.ShapeDtypeStruct((8, nb * Cp), jnp.float32)),
        grid_spec=pltpu.PrefetchScalarGridSpec(
            num_scalar_prefetch=0,
            grid=(nb,),
            in_specs=[
                pl.BlockSpec((tm, K), lambda i: (i, 0)),
                pl.BlockSpec((K, Cp), lambda i: (0, 0)),
            ],
            out_specs=[
                pl.BlockSpec((tm, Cp), lambda i: (i, 0)),
                pl.BlockSpec((8, Cp), lambda i: (0, i)),
            ],
        ),
        compiler_params=pltpu.CompilerParams(
            dimension_semantics=("parallel",)),
    )(A, Wm)

    # --- Finalize BN stats on tiny per-channel vectors (plain JAX) ----------
    stats = stats.reshape(8, nb, Cp)
    s1 = stats[0].sum(axis=0)                    # per-channel sum
    s2 = stats[1].sum(axis=0)                    # per-channel sum of squares
    mean = s1 / M                                # padded rows contribute 0
    var = jnp.maximum(s2 / M - mean * mean, 0.0)  # biased var (torch training BN)
    inv = jax.lax.rsqrt(var + eps)
    gamma_p = jnp.pad(gamma.astype(jnp.float32), (0, Cp - Cout))
    beta_p = jnp.pad(beta.astype(jnp.float32), (0, Cp - Cout))
    scale = (gamma_p * inv).reshape(1, Cp)
    shift = (beta_p - mean * gamma_p * inv).reshape(1, Cp)

    # --- Kernel 2: tiled normalize (folded scale/shift) + ReLU --------------
    out_flat = pl.pallas_call(
        _scale_shift_relu_kernel,
        out_shape=jax.ShapeDtypeStruct((Mp, Cp), jnp.float32),
        grid_spec=pltpu.PrefetchScalarGridSpec(
            num_scalar_prefetch=0,
            grid=(nb,),
            in_specs=[
                pl.BlockSpec((tm, Cp), lambda i: (i, 0)),
                pl.BlockSpec((1, Cp), lambda i: (0, 0)),
                pl.BlockSpec((1, Cp), lambda i: (0, 0)),
            ],
            out_specs=pl.BlockSpec((tm, Cp), lambda i: (i, 0)),
        ),
        compiler_params=pltpu.CompilerParams(
            dimension_semantics=("parallel",)),
    )(y, scale, shift)

    # Drop padded rows/channels; NHWC -> NCHW only for PyTorch API parity
    # (skip this transpose if downstream consumes NHWC).
    out = out_flat[:M, :Cout].reshape(N, OH, OW, Cout).transpose(0, 3, 1, 2)
    return out


# ------------------------------ reference ----------------------------------

def _reference(x, weight, bias, gamma, beta, *, stride, padding, dilation, eps=1e-5):
    # Same bf16 operand precision as the kernel, f32 accumulation.
    y = jax.lax.conv_general_dilated(
        x.astype(jnp.bfloat16), weight.astype(jnp.bfloat16),
        window_strides=(stride, stride),
        padding=[(padding, padding), (padding, padding)],
        rhs_dilation=(dilation, dilation),
        dimension_numbers=("NCHW", "OIHW", "NCHW"),
        preferred_element_type=jnp.float32,
    ) + bias[None, :, None, None]
    mean = y.mean(axis=(0, 2, 3), keepdims=True)
    var = ((y - mean) ** 2).mean(axis=(0, 2, 3), keepdims=True)
    yn = (y - mean) * jax.lax.rsqrt(var + eps)
    yn = yn * gamma[None, :, None, None] + beta[None, :, None, None]
    return jnp.maximum(yn, 0.0)


# -------------------------------- main --------------------------------------

if __name__ == "__main__":
    N, Cin, H, W = 2, 4, 16, 16
    Cout, Ksz = 8, 3
    stride, padding, dilation = 1, 1, 1

    key = jax.random.PRNGKey(0)
    kx, kw, kb, kg, kbt = jax.random.split(key, 5)

    x = jax.random.normal(kx, (N, Cin, H, W), dtype=jnp.float32)
    weight = jax.random.normal(kw, (Cout, Cin, Ksz, Ksz), dtype=jnp.float32) * 0.1
    bias = jax.random.normal(kb, (Cout,), dtype=jnp.float32) * 0.1
    gamma = 1.0 + 0.1 * jax.random.normal(kg, (Cout,), dtype=jnp.float32)
    beta = 0.1 * jax.random.normal(kbt, (Cout,), dtype=jnp.float32)

    out = conv2d_bn_relu(x, weight, bias, gamma, beta,
                         stride=stride, padding=padding, dilation=dilation)
    out = jax.block_until_ready(out)

    ref = _reference(x, weight, bias, gamma, beta,
                     stride=stride, padding=padding, dilation=dilation)
    assert out.shape == (N, Cout, H, W), out.shape
    max_err = float(jnp.max(jnp.abs(out - ref)))
    assert jnp.allclose(out, ref, atol=5e-3, rtol=5e-3), max_err

    print("KERNEL_OK")
</pallas_src>

<mosaic_0001>
module attributes {stable_mosaic.version = 11 : i64} {
  func.func @_conv_stats_kernel(%arg0: i32, %arg1: memref<512x36xbf16, #tpu.memory_space<vmem>>, %arg2: memref<36x128xbf16, #tpu.memory_space<vmem>>, %arg3: memref<512x128xf32, #tpu.memory_space<vmem>>, %arg4: memref<8x128xf32, #tpu.memory_space<vmem>>) attributes {dimension_semantics = [#tpu.dimension_semantics<parallel>], iteration_bounds = array<i64: 1>, scalar_prefetch = 0 : i64, scratch_operands = 0 : i64, tpu.core_type = #tpu.core_type<tc>, window_params = [{transform_indices = @transform_0, window_bounds = array<i64: 512, 36>}, {pipeline_mode = #tpu.pipeline_mode<synchronous>, transform_indices = @transform_1, window_bounds = array<i64: 36, 128>}, {transform_indices = @transform_2, window_bounds = array<i64: 512, 128>}, {transform_indices = @transform_3, window_bounds = array<i64: 8, 128>}]} {
    %c0 = arith.constant 0 : index
    %c0_0 = arith.constant 0 : index
    %0 = vector.load %arg1[%c0, %c0_0] : memref<512x36xbf16, #tpu.memory_space<vmem>>, vector<512x36xbf16>
    %c0_1 = arith.constant 0 : index
    %c0_2 = arith.constant 0 : index
    %1 = vector.load %arg2[%c0_1, %c0_2] : memref<36x128xbf16, #tpu.memory_space<vmem>>, vector<36x128xbf16>
    %cst = arith.constant dense<0.000000e+00> : vector<512x128xf32>
    %2 = tpu.matmul %0, %1, %cst {dimension_numbers = #tpu.dot_dimension_numbers<[1], [0], [0], [1], [0, 0, 1, 1], [], []>} : vector<512x36xbf16>, vector<36x128xbf16>, vector<512x128xf32> -> vector<512x128xf32>
    %c0_3 = arith.constant 0 : index
    %c0_4 = arith.constant 0 : index
    %3 = vector.load %arg3[%c0_3, %c0_4] : memref<512x128xf32, #tpu.memory_space<vmem>>, vector<512x128xf32>
    tpu.vector_store %arg3[%c0_3, %c0_4], %2 {strides = array<i32>} : memref<512x128xf32, #tpu.memory_space<vmem>>, vector<512x128xf32>,
    %cst_5 = arith.constant dense<0.000000e+00> : vector<128xf32>
    %4 = vector.multi_reduction <add>, %2, %cst_5 [0] : vector<512x128xf32> to vector<128xf32>
    %5 = vector.shape_cast %4 : vector<128xf32> to vector<1x128xf32>
    %6 = arith.mulf %2, %2 : vector<512x128xf32>
    %cst_6 = arith.constant dense<0.000000e+00> : vector<128xf32>
    %7 = vector.multi_reduction <add>, %6, %cst_6 [0] : vector<512x128xf32> to vector<128xf32>
    %8 = vector.shape_cast %7 : vector<128xf32> to vector<1x128xf32>
    %9 = tpu.iota {dimensions = array<i32: 0>} : vector<8x128xi32>
    %c0_i32 = arith.constant 0 : i32
    %10 = vector.broadcast %c0_i32 : i32 to vector<8x128xi32>
    %11 = arith.cmpi eq, %9, %10 : vector<8x128xi32>
    %c1_i32 = arith.constant 1 : i32
    %12 = vector.broadcast %c1_i32 : i32 to vector<8x128xi32>
    %13 = arith.cmpi eq, %9, %12 : vector<8x128xi32>
    %cst_7 = arith.constant 0.000000e+00 : f32
    %14 = vector.shape_cast %8 : vector<1x128xf32> to vector<1x128xf32>
    %15 = vector.broadcast %14 : vector<1x128xf32> to vector<8x128xf32>
    %16 = vector.broadcast %cst_7 : f32 to vector<8x128xf32>
    %17 = arith.select %13, %15, %16 : vector<8x128xi1>, vector<8x128xf32>
    %18 = vector.shape_cast %5 : vector<1x128xf32> to vector<1x128xf32>
    %19 = vector.broadcast %18 : vector<1x128xf32> to vector<8x128xf32>
    %20 = arith.select %11, %19, %17 : vector<8x128xi1>, vector<8x128xf32>
    %c0_8 = arith.constant 0 : index
    %c0_9 = arith.constant 0 : index
    %21 = vector.load %arg4[%c0_8, %c0_9] : memref<8x128xf32, #tpu.memory_space<vmem>>, vector<8x128xf32>
    tpu.vector_store %arg4[%c0_8, %c0_9], %20 {strides = array<i32>} : memref<8x128xf32, #tpu.memory_space<vmem>>, vector<8x128xf32>,
    return
  }
  func.func @transform_0(%arg0: i32) -> (i32, i32) {
    %c0_i32 = arith.constant 0 : i32
    %c0_i32_0 = arith.constant 0 : i32
    return %arg0, %c0_i32 : i32, i32
  }
  func.func @transform_1(%arg0: i32) -> (i32, i32) {
    %c0_i32 = arith.constant 0 : i32
    %c0_i32_0 = arith.constant 0 : i32
    %c0_i32_1 = arith.constant 0 : i32
    return %c0_i32, %c0_i32_0 : i32, i32
  }
  func.func @transform_2(%arg0: i32) -> (i32, i32) {
    %c0_i32 = arith.constant 0 : i32
    %c0_i32_0 = arith.constant 0 : i32
    return %arg0, %c0_i32 : i32, i32
  }
  func.func @transform_3(%arg0: i32) -> (i32, i32) {
    %c0_i32 = arith.constant 0 : i32
    %c0_i32_0 = arith.constant 0 : i32
    return %c0_i32, %arg0 : i32, i32
  }
}

</mosaic_0001>

<llo_original>
// kernel: tpu_custom_call.1
$region0: #{tpu_custom_call.1}
  #allocation0 [shape = 'u32[]', space=smem, size = 0x4, offset = 0x4, fixed_abs, tag = 'smem constant byte address 0x4 - core index']
  #allocation1 [shape = 'u32[72,128]{1,0:T(1,128)}', space=vmem, size = 0x9000, scoped, tag = 'internal scratch']
  %s0 = inlined_call_operand.vmem [shape: bf16[512,36], index: 0, kind: input, shape index: {}]
  %s1 = inlined_call_operand.vmem [shape: bf16[36,128], index: 1, kind: input, shape index: {}]
  %s2 = inlined_call_operand.hbm [shape: f32[512,128], index: 2, kind: output, shape index: {0}]
  %s3 = inlined_call_operand.hbm [shape: f32[8,128], index: 3, kind: output, shape index: {1}]
  %4 = xla_tuple %s2, %s3
  %s5 = sld [smem:[#allocation0]]
  $region26: #{tpu_custom_call.1} parent=0
    _
  %s7 = ssub.s32 1, %s5
  %s8 = scalar_select 0, %s7, %s5
  $region1: #{tpu_custom_call.1} parent=0
    #allocation2 [shape = 'u8[262144]{0}', space=vmem, size = 0x40000, scoped, tag = 'output window, operand 0, single buffered']
    #allocation3 [shape = 's32[1]{0}', space=sflag, size = 0x4, scoped, tag = 'scoped memory for tpu_custom_call.1']
    #allocation4 [shape = 'u8[4096]{0}', space=vmem, size = 0x1000, scoped, tag = 'output window, operand 1, single buffered']
    #allocation5 [shape = 's32[1]{0}', space=sflag, size = 0x4, scoped, tag = 'scoped memory for tpu_custom_call.1']
    %9 = vsyncpa [#allocation3], 0
    %10 = vsyncpa [#allocation5], 0
    // Predicated region
    $region2: #{tpu_custom_call.1} parent=1 // pred_check
      _
    $region3: #{tpu_custom_call.1} parent=1 // pred_check_branch
      %12 = sbr.rel (0) target = $region5
    $region4: #{tpu_custom_call.1} parent=1 // pred_region
      _
    $region5: #{tpu_custom_call.1} parent=1 // pred_fallthru
      _
    // Predicated region
    $region6: #{tpu_custom_call.1} parent=1 // pred_check
      _
    $region7: #{tpu_custom_call.1} parent=1 // pred_check_branch
      %14 = sbr.rel (0) target = $region9
    $region8: #{tpu_custom_call.1} parent=1 // pred_region
      _
    $region9: #{tpu_custom_call.1} parent=1 // pred_fallthru
      _
    %v16 = vld [vmem:[%s0] sm:$0xf]
    %v17 = vld [vmem:[%s0 + $0x4] sm:$0xf]
    %v18 = vld [vmem:[%s0 + $0x8] sm:$0xf]
    %v19 = vld [vmem:[%s0 + $0xc] sm:$0xf]
    %v20 = vld [vmem:[%s0 + $0x10] sm:$0xf]
    %v21 = vld [vmem:[%s0 + $0x14] sm:$0xf]
    %v22 = vld [vmem:[%s0 + $0x18] sm:$0xf]
    %v23 = vld [vmem:[%s0 + $0x1c] sm:$0xf]
    %v24 = vld [vmem:[%s0 + $0x20] sm:$0xf]
    %v25 = vld [vmem:[%s0 + $0x24] sm:$0xf]
    %v26 = vld [vmem:[%s0 + $0x28] sm:$0xf]
    %v27 = vld [vmem:[%s0 + $0x2c] sm:$0xf]
    %v28 = vld [vmem:[%s0 + $0x30] sm:$0xf]
    %v29 = vld [vmem:[%s0 + $0x34] sm:$0xf]
    %v30 = vld [vmem:[%s0 + $0x38] sm:$0xf]
    %v31 = vld [vmem:[%s0 + $0x3c] sm:$0xf]
    %v32 = vld [vmem:[%s0 + $0x40] sm:$0xf]
    %v33 = vld [vmem:[%s0 + $0x44] sm:$0xf]
    %v34 = vld [vmem:[%s0 + $0x48] sm:$0xf]
    %v35 = vld [vmem:[%s0 + $0x4c] sm:$0xf]
    %v36 = vld [vmem:[%s0 + $0x50] sm:$0xf]
    %v37 = vld [vmem:[%s0 + $0x54] sm:$0xf]
    %v38 = vld [vmem:[%s0 + $0x58] sm:$0xf]
    %v39 = vld [vmem:[%s0 + $0x5c] sm:$0xf]
    %v40 = vld [vmem:[%s0 + $0x60] sm:$0xf]
    %v41 = vld [vmem:[%s0 + $0x64] sm:$0xf]
    %v42 = vld [vmem:[%s0 + $0x68] sm:$0xf]
    %v43 = vld [vmem:[%s0 + $0x6c] sm:$0xf]
    %v44 = vld [vmem:[%s0 + $0x70] sm:$0xf]
    %v45 = vld [vmem:[%s0 + $0x74] sm:$0xf]
    %v46 = vld [vmem:[%s0 + $0x78] sm:$0xf]
    %v47 = vld [vmem:[%s0 + $0x7c] sm:$0xf]
    %v48 = vld [vmem:[%s0 + $0x80] sm:$0xf]
    %v49 = vld [vmem:[%s0 + $0x84] sm:$0xf]
    %v50 = vld [vmem:[%s0 + $0x88] sm:$0xf]
    %v51 = vld [vmem:[%s0 + $0x8c] sm:$0xf]
    %v52 = vld [vmem:[%s0 + $0x90] sm:$0xf]
    %v53 = vld [vmem:[%s0 + $0x94] sm:$0xf]
    %v54 = vld [vmem:[%s0 + $0x98] sm:$0xf]
    %v55 = vld [vmem:[%s0 + $0x9c] sm:$0xf]
    %v56 = vld [vmem:[%s0 + $0xa0] sm:$0xf]
    %v57 = vld [vmem:[%s0 + $0xa4] sm:$0xf]
    %v58 = vld [vmem:[%s0 + $0xa8] sm:$0xf]
    %v59 = vld [vmem:[%s0 + $0xac] sm:$0xf]
    %v60 = vld [vmem:[%s0 + $0xb0] sm:$0xf]
    %v61 = vld [vmem:[%s0 + $0xb4] sm:$0xf]
    %v62 = vld [vmem:[%s0 + $0xb8] sm:$0xf]
    %v63 = vld [vmem:[%s0 + $0xbc] sm:$0xf]
    %v64 = vld [vmem:[%s0 + $0xc0] sm:$0xf]
    %v65 = vld [vmem:[%s0 + $0xc4] sm:$0xf]
    %v66 = vld [vmem:[%s0 + $0xc8] sm:$0xf]
    %v67 = vld [vmem:[%s0 + $0xcc] sm:$0xf]
    %v68 = vld [vmem:[%s0 + $0xd0] sm:$0xf]
    %v69 = vld [vmem:[%s0 + $0xd4] sm:$0xf]
    %v70 = vld [vmem:[%s0 + $0xd8] sm:$0xf]
    %v71 = vld [vmem:[%s0 + $0xdc] sm:$0xf]
    %v72 = vld [vmem:[%s0 + $0xe0] sm:$0xf]
    %v73 = vld [vmem:[%s0 + $0xe4] sm:$0xf]
    %v74 = vld [vmem:[%s0 + $0xe8] sm:$0xf]
    %v75 = vld [vmem:[%s0 + $0xec] sm:$0xf]
    %v76 = vld [vmem:[%s0 + $0xf0] sm:$0xf]
    %v77 = vld [vmem:[%s0 + $0xf4] sm:$0xf]
    %v78 = vld [vmem:[%s0 + $0xf8] sm:$0xf]
    %v79 = vld [vmem:[%s0 + $0xfc] sm:$0xf]
    %v80 = vld [vmem:[%s1] sm:$0xf]
    %v81 = vld [vmem:[%s1 + $0x4] sm:$0xf]
    %v82 = vld [vmem:[%s1 + $0x8] sm:$0xf]
    %v83 = vld [vmem:[%s1 + $0xc] sm:$0xf]
    %v84 = vld [vmem:[%s1 + $0x10] sm:$0x3]
    %v149 = vunpack.c.l.b16 %v16
    %v150 = vunpack.c.l.b16 %v17
    %v151 = vunpack.c.l.b16 %v18
    %v152 = vunpack.c.l.b16 %v19
    %v153 = vunpack.c.l.b16 %v20
    %v154 = vunpack.c.l.b16 %v21
    %v155 = vunpack.c.l.b16 %v22
    %v156 = vunpack.c.l.b16 %v23
    %v157 = vunpack.c.l.b16 %v24
    %v158 = vunpack.c.l.b16 %v25
    %v159 = vunpack.c.l.b16 %v26
    %v160 = vunpack.c.l.b16 %v27
    %v161 = vunpack.c.l.b16 %v28
    %v162 = vunpack.c.l.b16 %v29
    %v163 = vunpack.c.l.b16 %v30
    %v164 = vunpack.c.l.b16 %v31
    %v165 = vunpack.c.l.b16 %v32
    %v166 = vunpack.c.l.b16 %v33
    %v167 = vunpack.c.l.b16 %v34
    %v168 = vunpack.c.l.b16 %v35
    %v169 = vunpack.c.l.b16 %v36
    %v170 = vunpack.c.l.b16 %v37
    %v171 = vunpack.c.l.b16 %v38
    %v172 = vunpack.c.l.b16 %v39
    %v173 = vunpack.c.l.b16 %v40
    %v174 = vunpack.c.l.b16 %v41
    %v175 = vunpack.c.l.b16 %v42
    %v176 = vunpack.c.l.b16 %v43
    %v177 = vunpack.c.l.b16 %v44
    %v178 = vunpack.c.l.b16 %v45
    %v179 = vunpack.c.l.b16 %v46
    %v180 = vunpack.c.l.b16 %v47
    %v181 = vunpack.c.l.b16 %v48
    %v182 = vunpack.c.l.b16 %v49
    %v183 = vunpack.c.l.b16 %v50
    %v184 = vunpack.c.l.b16 %v51
    %v185 = vunpack.c.l.b16 %v52
    %v186 = vunpack.c.l.b16 %v53
    %v187 = vunpack.c.l.b16 %v54
    %v188 = vunpack.c.l.b16 %v55
    %v189 = vunpack.c.l.b16 %v56
    %v190 = vunpack.c.l.b16 %v57
    %v191 = vunpack.c.l.b16 %v58
    %v192 = vunpack.c.l.b16 %v59
    %v193 = vunpack.c.l.b16 %v60
    %v194 = vunpack.c.l.b16 %v61
    %v195 = vunpack.c.l.b16 %v62
    %v196 = vunpack.c.l.b16 %v63
    %v197 = vunpack.c.l.b16 %v64
    %v198 = vunpack.c.l.b16 %v65
    %v199 = vunpack.c.l.b16 %v66
    %v200 = vunpack.c.l.b16 %v67
    %v201 = vunpack.c.l.b16 %v68
    %v202 = vunpack.c.l.b16 %v69
    %v203 = vunpack.c.l.b16 %v70
    %v204 = vunpack.c.l.b16 %v71
    %v205 = vunpack.c.l.b16 %v72
    %v206 = vunpack.c.l.b16 %v73
    %v207 = vunpack.c.l.b16 %v74
    %v208 = vunpack.c.l.b16 %v75
    %v209 = vunpack.c.l.b16 %v76
    %v210 = vunpack.c.l.b16 %v77
    %v211 = vunpack.c.l.b16 %v78
    %v212 = vunpack.c.l.b16 %v79
    %v213 = vpack.c.b16 %v150, %v149
    %v214 = vpack.c.b16 %v152, %v151
    %v215 = vpack.c.b16 %v154, %v153
    %v216 = vpack.c.b16 %v156, %v155
    %v217 = vpack.c.b16 %v158, %v157
    %v218 = vpack.c.b16 %v160, %v159
    %v219 = vpack.c.b16 %v162, %v161
    %v220 = vpack.c.b16 %v164, %v163
    %v221 = vpack.c.b16 %v166, %v165
    %v222 = vpack.c.b16 %v168, %v167
    %v223 = vpack.c.b16 %v170, %v169
    %v224 = vpack.c.b16 %v172, %v171
    %v225 = vpack.c.b16 %v174, %v173
    %v226 = vpack.c.b16 %v176, %v175
    %v227 = vpack.c.b16 %v178, %v177
    %v228 = vpack.c.b16 %v180, %v179
    %v229 = vpack.c.b16 %v182, %v181
    %v230 = vpack.c.b16 %v184, %v183
    %v231 = vpack.c.b16 %v186, %v185
    %v232 = vpack.c.b16 %v188, %v187
    %v233 = vpack.c.b16 %v190, %v189
    %v234 = vpack.c.b16 %v192, %v191
    %v235 = vpack.c.b16 %v194, %v193
    %v236 = vpack.c.b16 %v196, %v195
    %v237 = vpack.c.b16 %v198, %v197
    %v238 = vpack.c.b16 %v200, %v199
    %v239 = vpack.c.b16 %v202, %v201
    %v240 = vpack.c.b16 %v204, %v203
    %v241 = vpack.c.b16 %v206, %v205
    %v242 = vpack.c.b16 %v208, %v207
    %v243 = vpack.c.b16 %v210, %v209
    %v244 = vpack.c.b16 %v212, %v211
    %v250 = vunpack.c.l.b16 %v80
    %v251 = vunpack.c.l.b16 %v81
    %v252 = vunpack.c.l.b16 %v82
    %v253 = vunpack.c.l.b16 %v83
    %v254 = vunpack.c.l.b16 %v84
    %v255 = vpack.c.b16 %v251, %v250
    %v256 = vpack.c.b16 %v253, %v252
    %v257 = vpack.c.b16 %v254, %v254
    %vm260 = vcmask 293888
    %v262 = vsel %vm260, %v213, 0
    %v265 = vsel %vm260, %v214, 0
    %v268 = vsel %vm260, %v215, 0
    %v271 = vsel %vm260, %v216, 0
    %v274 = vsel %vm260, %v217, 0
    %v277 = vsel %vm260, %v218, 0
    %v280 = vsel %vm260, %v219, 0
    %v283 = vsel %vm260, %v220, 0
    %v286 = vsel %vm260, %v221, 0
    %v289 = vsel %vm260, %v222, 0
    %v292 = vsel %vm260, %v223, 0
    %v295 = vsel %vm260, %v224, 0
    %v298 = vsel %vm260, %v225, 0
    %v301 = vsel %vm260, %v226, 0
    %v304 = vsel %vm260, %v227, 0
    %v307 = vsel %vm260, %v228, 0
    %v310 = vsel %vm260, %v229, 0
    %v313 = vsel %vm260, %v230, 0
    %v316 = vsel %vm260, %v231, 0
    %v319 = vsel %vm260, %v232, 0
    %v322 = vsel %vm260, %v233, 0
    %v325 = vsel %vm260, %v234, 0
    %v328 = vsel %vm260, %v235, 0
    %v331 = vsel %vm260, %v236, 0
    %v334 = vsel %vm260, %v237, 0
    %v337 = vsel %vm260, %v238, 0
    %v340 = vsel %vm260, %v239, 0
    %v343 = vsel %vm260, %v240, 0
    %v346 = vsel %vm260, %v241, 0
    %v349 = vsel %vm260, %v242, 0
    %v352 = vsel %vm260, %v243, 0
    %v355 = vsel %vm260, %v244, 0
    %vm357 = vcmask 1041408
    %v359 = vsel %vm357, %v257, 0
    %361 = vmatpush.bf16.msra.mxu0 0
    %362 = vmatpush.bf16.msra.mxu0 0
    %363 = vmatpush.bf16.msra.mxu0 0
    %364 = vmatpush.bf16.msra.mxu0 0
    %365 = vmatpush.bf16.msra.mxu0 0
    %366 = vmatpush.bf16.msra.mxu0 %v359
    %367 = vmatpush.bf16.msra.mxu0 %v256
    %368 = vmatpush.bf16.msra.mxu0 %v255
    %369 = vmatmul.bf16.gmra.mxu0 %v262
    %v370 = vpop.f32.mrf.mxu0
    %v371 = vadd.f32 0.0, %v370
    %v372 = vpop.f32.mrf.mxu0
    %v373 = vadd.f32 0.0, %v372
    %374 = vmatmul.bf16.gmra.mxu0 %v265
    %v375 = vpop.f32.mrf.mxu0
    %v376 = vadd.f32 0.0, %v375
    %v377 = vpop.f32.mrf.mxu0
    %v378 = vadd.f32 0.0, %v377
    %379 = vmatmul.bf16.gmra.mxu0 %v268
    %v380 = vpop.f32.mrf.mxu0
    %v381 = vadd.f32 0.0, %v380
    %v382 = vpop.f32.mrf.mxu0
    %v383 = vadd.f32 0.0, %v382
    %384 = vmatmul.bf16.gmra.mxu0 %v271
    %v385 = vpop.f32.mrf.mxu0
    %v386 = vadd.f32 0.0, %v385
    %v387 = vpop.f32.mrf.mxu0
    %v388 = vadd.f32 0.0, %v387
    %389 = vmatmul.bf16.gmra.mxu0 %v274
    %v390 = vpop.f32.mrf.mxu0
    %v391 = vadd.f32 0.0, %v390
    %v392 = vpop.f32.mrf.mxu0
    %v393 = vadd.f32 0.0, %v392
    %394 = vmatmul.bf16.gmra.mxu0 %v277
    %v395 = vpop.f32.mrf.mxu0
    %v396 = vadd.f32 0.0, %v395
    %v397 = vpop.f32.mrf.mxu0
    %v398 = vadd.f32 0.0, %v397
    %399 = vmatmul.bf16.gmra.mxu0 %v280
    %v400 = vpop.f32.mrf.mxu0
    %v401 = vadd.f32 0.0, %v400
    %v402 = vpop.f32.mrf.mxu0
    %v403 = vadd.f32 0.0, %v402
    %404 = vmatmul.bf16.gmra.mxu0 %v283
    %v405 = vpop.f32.mrf.mxu0
    %v406 = vadd.f32 0.0, %v405
    %v407 = vpop.f32.mrf.mxu0
    %v408 = vadd.f32 0.0, %v407
    %409 = vmatmul.bf16.gmra.mxu0 %v286
    %v410 = vpop.f32.mrf.mxu0
    %v411 = vadd.f32 0.0, %v410
    %v412 = vpop.f32.mrf.mxu0
    %v413 = vadd.f32 0.0, %v412
    %414 = vmatmul.bf16.gmra.mxu0 %v289
    %v415 = vpop.f32.mrf.mxu0
    %v416 = vadd.f32 0.0, %v415
    %v417 = vpop.f32.mrf.mxu0
    %v418 = vadd.f32 0.0, %v417
    %419 = vmatmul.bf16.gmra.mxu0 %v292
    %v420 = vpop.f32.mrf.mxu0
    %v421 = vadd.f32 0.0, %v420
    %v422 = vpop.f32.mrf.mxu0
    %v423 = vadd.f32 0.0, %v422
    %424 = vmatmul.bf16.gmra.mxu0 %v295
    %v425 = vpop.f32.mrf.mxu0
    %v426 = vadd.f32 0.0, %v425
    %v427 = vpop.f32.mrf.mxu0
    %v428 = vadd.f32 0.0, %v427
    %429 = vmatmul.bf16.gmra.mxu0 %v298
    %v430 = vpop.f32.mrf.mxu0
    %v431 = vadd.f32 0.0, %v430
    %v432 = vpop.f32.mrf.mxu0
    %v433 = vadd.f32 0.0, %v432
    %434 = vmatmul.bf16.gmra.mxu0 %v301
    %v435 = vpop.f32.mrf.mxu0
    %v436 = vadd.f32 0.0, %v435
    %v437 = vpop.f32.mrf.mxu0
    %v438 = vadd.f32 0.0, %v437
    %439 = vmatmul.bf16.gmra.mxu0 %v304
    %v440 = vpop.f32.mrf.mxu0
    %v441 = vadd.f32 0.0, %v440
    %v442 = vpop.f32.mrf.mxu0
    %v443 = vadd.f32 0.0, %v442
    %444 = vmatmul.bf16.gmra.mxu0 %v307
    %v445 = vpop.f32.mrf.mxu0
    %v446 = vadd.f32 0.0, %v445
    %v447 = vpop.f32.mrf.mxu0
    %v448 = vadd.f32 0.0, %v447
    %449 = vmatmul.bf16.gmra.mxu0 %v310
    %v450 = vpop.f32.mrf.mxu0
    %v451 = vadd.f32 0.0, %v450
    %v452 = vpop.f32.mrf.mxu0
    %v453 = vadd.f32 0.0, %v452
    %454 = vmatmul.bf16.gmra.mxu0 %v313
    %v455 = vpop.f32.mrf.mxu0
    %v456 = vadd.f32 0.0, %v455
    %v457 = vpop.f32.mrf.mxu0
    %v458 = vadd.f32 0.0, %v457
    %459 = vmatmul.bf16.gmra.mxu0 %v316
    %v460 = vpop.f32.mrf.mxu0
    %v461 = vadd.f32 0.0, %v460
    %v462 = vpop.f32.mrf.mxu0
    %v463 = vadd.f32 0.0, %v462
    %464 = vmatmul.bf16.gmra.mxu0 %v319
    %v465 = vpop.f32.mrf.mxu0
    %v466 = vadd.f32 0.0, %v465
    %v467 = vpop.f32.mrf.mxu0
    %v468 = vadd.f32 0.0, %v467
    %469 = vmatmul.bf16.gmra.mxu0 %v322
    %v470 = vpop.f32.mrf.mxu0
    %v471 = vadd.f32 0.0, %v470
    %v472 = vpop.f32.mrf.mxu0
    %v473 = vadd.f32 0.0, %v472
    %474 = vmatmul.bf16.gmra.mxu0 %v325
    %v475 = vpop.f32.mrf.mxu0
    %v476 = vadd.f32 0.0, %v475
    %v477 = vpop.f32.mrf.mxu0
    %v478 = vadd.f32 0.0, %v477
    %479 = vmatmul.bf16.gmra.mxu0 %v328
    %v480 = vpop.f32.mrf.mxu0
    %v481 = vadd.f32 0.0, %v480
    %v482 = vpop.f32.mrf.mxu0
    %v483 = vadd.f32 0.0, %v482
    %484 = vmatmul.bf16.gmra.mxu0 %v331
    %v485 = vpop.f32.mrf.mxu0
    %v486 = vadd.f32 0.0, %v485
    %v487 = vpop.f32.mrf.mxu0
    %v488 = vadd.f32 0.0, %v487
    %489 = vmatmul.bf16.gmra.mxu0 %v334
    %v490 = vpop.f32.mrf.mxu0
    %v491 = vadd.f32 0.0, %v490
    %v492 = vpop.f32.mrf.mxu0
    %v493 = vadd.f32 0.0, %v492
    %494 = vmatmul.bf16.gmra.mxu0 %v337
    %v495 = vpop.f32.mrf.mxu0
    %v496 = vadd.f32 0.0, %v495
    %v497 = vpop.f32.mrf.mxu0
    %v498 = vadd.f32 0.0, %v497
    %499 = vmatmul.bf16.gmra.mxu0 %v340
    %v500 = vpop.f32.mrf.mxu0
    %v501 = vadd.f32 0.0, %v500
    %v502 = vpop.f32.mrf.mxu0
    %v503 = vadd.f32 0.0, %v502
    %504 = vmatmul.bf16.gmra.mxu0 %v343
    %v505 = vpop.f32.mrf.mxu0
    %v506 = vadd.f32 0.0, %v505
    %v507 = vpop.f32.mrf.mxu0
    %v508 = vadd.f32 0.0, %v507
    %509 = vmatmul.bf16.gmra.mxu0 %v346
    %v510 = vpop.f32.mrf.mxu0
    %v511 = vadd.f32 0.0, %v510
    %v512 = vpop.f32.mrf.mxu0
    %v513 = vadd.f32 0.0, %v512
    %514 = vmatmul.bf16.gmra.mxu0 %v349
    %v515 = vpop.f32.mrf.mxu0
    %v516 = vadd.f32 0.0, %v515
    %v517 = vpop.f32.mrf.mxu0
    %v518 = vadd.f32 0.0, %v517
    %519 = vmatmul.bf16.gmra.mxu0 %v352
    %v520 = vpop.f32.mrf.mxu0
    %v521 = vadd.f32 0.0, %v520
    %v522 = vpop.f32.mrf.mxu0
    %v523 = vadd.f32 0.0, %v522
    %524 = vmatmul.bf16.gmra.mxu0 %v355
    %v525 = vpop.f32.mrf.mxu0
    %v526 = vadd.f32 0.0, %v525
    %v527 = vpop.f32.mrf.mxu0
    %v528 = vadd.f32 0.0, %v527
    %529 = vdwg.mxu0
    %530 = vst [vmem:[#allocation2] sm:$0xff] %v371
    %531 = vst [vmem:[#allocation2 + $0x8] sm:$0xff] %v373
    %532 = vst [vmem:[#allocation2 + $0x10] sm:$0xff] %v376
    %533 = vst [vmem:[#allocation2 + $0x18] sm:$0xff] %v378
    %534 = vst [vmem:[#allocation2 + $0x20] sm:$0xff] %v381
    %535 = vst [vmem:[#allocation2 + $0x28] sm:$0xff] %v383
    %536 = vst [vmem:[#allocation2 + $0x30] sm:$0xff] %v386
    %537 = vst [vmem:[#allocation2 + $0x38] sm:$0xff] %v388
    %538 = vst [vmem:[#allocation2 + $0x40] sm:$0xff] %v391
    %539 = vst [vmem:[#allocation2 + $0x48] sm:$0xff] %v393
    %540 = vst [vmem:[#allocation2 + $0x50] sm:$0xff] %v396
    %541 = vst [vmem:[#allocation2 + $0x58] sm:$0xff] %v398
    %542 = vst [vmem:[#allocation2 + $0x60] sm:$0xff] %v401
    %543 = vst [vmem:[#allocation2 + $0x68] sm:$0xff] %v403
    %544 = vst [vmem:[#allocation2 + $0x70] sm:$0xff] %v406
    %545 = vst [vmem:[#allocation2 + $0x78] sm:$0xff] %v408
    %546 = vst [vmem:[#allocation2 + $0x80] sm:$0xff] %v411
    %547 = vst [vmem:[#allocation2 + $0x88] sm:$0xff] %v413
    %548 = vst [vmem:[#allocation2 + $0x90] sm:$0xff] %v416
    %549 = vst [vmem:[#allocation2 + $0x98] sm:$0xff] %v418
    %550 = vst [vmem:[#allocation2 + $0xa0] sm:$0xff] %v421
    %551 = vst [vmem:[#allocation2 + $0xa8] sm:$0xff] %v423
    %552 = vst [vmem:[#allocation2 + $0xb0] sm:$0xff] %v426
    %553 = vst [vmem:[#allocation2 + $0xb8] sm:$0xff] %v428
    %554 = vst [vmem:[#allocation2 + $0xc0] sm:$0xff] %v431
    %555 = vst [vmem:[#allocation2 + $0xc8] sm:$0xff] %v433
    %556 = vst [vmem:[#allocation2 + $0xd0] sm:$0xff] %v436
    %557 = vst [vmem:[#allocation2 + $0xd8] sm:$0xff] %v438
    %558 = vst [vmem:[#allocation2 + $0xe0] sm:$0xff] %v441
    %559 = vst [vmem:[#allocation2 + $0xe8] sm:$0xff] %v443
    %560 = vst [vmem:[#allocation2 + $0xf0] sm:$0xff] %v446
    %561 = vst [vmem:[#allocation2 + $0xf8] sm:$0xff] %v448
    %562 = vst [vmem:[#allocation2 + $0x100] sm:$0xff] %v451
    %563 = vst [vmem:[#allocation2 + $0x108] sm:$0xff] %v453
    %564 = vst [vmem:[#allocation2 + $0x110] sm:$0xff] %v456
    %565 = vst [vmem:[#allocation2 + $0x118] sm:$0xff] %v458
    %566 = vst [vmem:[#allocation2 + $0x120] sm:$0xff] %v461
    %567 = vst [vmem:[#allocation2 + $0x128] sm:$0xff] %v463
    %568 = vst [vmem:[#allocation2 + $0x130] sm:$0xff] %v466
    %569 = vst [vmem:[#allocation2 + $0x138] sm:$0xff] %v468
    %570 = vst [vmem:[#allocation2 + $0x140] sm:$0xff] %v471
    %571 = vst [vmem:[#allocation2 + $0x148] sm:$0xff] %v473
    %572 = vst [vmem:[#allocation2 + $0x150] sm:$0xff] %v476
    %573 = vst [vmem:[#allocation2 + $0x158] sm:$0xff] %v478
    %574 = vst [vmem:[#allocation2 + $0x160] sm:$0xff] %v481
    %575 = vst [vmem:[#allocation2 + $0x168] sm:$0xff] %v483
    %576 = vst [vmem:[#allocation2 + $0x170] sm:$0xff] %v486
    %577 = vst [vmem:[#allocation2 + $0x178] sm:$0xff] %v488
    %578 = vst [vmem:[#allocation2 + $0x180] sm:$0xff] %v491
    %579 = vst [vmem:[#allocation2 + $0x188] sm:$0xff] %v493
    %580 = vst [vmem:[#allocation2 + $0x190] sm:$0xff] %v496
    %581 = vst [vmem:[#allocation2 + $0x198] sm:$0xff] %v498
    %582 = vst [vmem:[#allocation2 + $0x1a0] sm:$0xff] %v501
    %583 = vst [vmem:[#allocation2 + $0x1a8] sm:$0xff] %v503
    %584 = vst [vmem:[#allocation2 + $0x1b0] sm:$0xff] %v506
    %585 = vst [vmem:[#allocation2 + $0x1b8] sm:$0xff] %v508
    %586 = vst [vmem:[#allocation2 + $0x1c0] sm:$0xff] %v511
    %587 = vst [vmem:[#allocation2 + $0x1c8] sm:$0xff] %v513
    %588 = vst [vmem:[#allocation2 + $0x1d0] sm:$0xff] %v516
    %589 = vst [vmem:[#allocation2 + $0x1d8] sm:$0xff] %v518
    %590 = vst [vmem:[#allocation2 + $0x1e0] sm:$0xff] %v521
    %591 = vst [vmem:[#allocation2 + $0x1e8] sm:$0xff] %v523
    %592 = vst [vmem:[#allocation2 + $0x1f0] sm:$0xff] %v526
    %593 = vst [vmem:[#allocation2 + $0x1f8] sm:$0xff] %v528
    %v594 = vadd.f32 %v371, %v373
    %v595 = vadd.f32 %v594, %v376
    %v596 = vadd.f32 %v595, %v378
    %v597 = vadd.f32 %v596, %v381
    %v598 = vadd.f32 %v597, %v383
    %v599 = vadd.f32 %v598, %v386
    %v600 = vadd.f32 %v599, %v388
    %v601 = vadd.f32 %v600, %v391
    %v602 = vadd.f32 %v601, %v393
    %v603 = vadd.f32 %v602, %v396
    %v604 = vadd.f32 %v603, %v398
    %v605 = vadd.f32 %v604, %v401
    %v606 = vadd.f32 %v605, %v403
    %v607 = vadd.f32 %v606, %v406
    %v608 = vadd.f32 %v607, %v408
    %v609 = vadd.f32 %v608, %v411
    %v610 = vadd.f32 %v609, %v413
    %v611 = vadd.f32 %v610, %v416
    %v612 = vadd.f32 %v611, %v418
    %v613 = vadd.f32 %v612, %v421
    %v614 = vadd.f32 %v613, %v423
    %v615 = vadd.f32 %v614, %v426
    %v616 = vadd.f32 %v615, %v428
    %v617 = vadd.f32 %v616, %v431
    %v618 = vadd.f32 %v617, %v433
    %v619 = vadd.f32 %v618, %v436
    %v620 = vadd.f32 %v619, %v438
    %v621 = vadd.f32 %v620, %v441
    %v622 = vadd.f32 %v621, %v443
    %v623 = vadd.f32 %v622, %v446
    %v624 = vadd.f32 %v623, %v448
    %v625 = vadd.f32 %v624, %v451
    %v626 = vadd.f32 %v625, %v453
    %v627 = vadd.f32 %v626, %v456
    %v628 = vadd.f32 %v627, %v458
    %v629 = vadd.f32 %v628, %v461
    %v630 = vadd.f32 %v629, %v463
    %v631 = vadd.f32 %v630, %v466
    %v632 = vadd.f32 %v631, %v468
    %v633 = vadd.f32 %v632, %v471
    %v634 = vadd.f32 %v633, %v473
    %v635 = vadd.f32 %v634, %v476
    %v636 = vadd.f32 %v635, %v478
    %v637 = vadd.f32 %v636, %v481
    %v638 = vadd.f32 %v637, %v483
    %v639 = vadd.f32 %v638, %v486
    %v640 = vadd.f32 %v639, %v488
    %v641 = vadd.f32 %v640, %v491
    %v642 = vadd.f32 %v641, %v493
    %v643 = vadd.f32 %v642, %v496
    %v644 = vadd.f32 %v643, %v498
    %v645 = vadd.f32 %v644, %v501
    %v646 = vadd.f32 %v645, %v503
    %v647 = vadd.f32 %v646, %v506
    %v648 = vadd.f32 %v647, %v508
    %v649 = vadd.f32 %v648, %v511
    %v650 = vadd.f32 %v649, %v513
    %v651 = vadd.f32 %v650, %v516
    %v652 = vadd.f32 %v651, %v518
    %v653 = vadd.f32 %v652, %v521
    %v654 = vadd.f32 %v653, %v523
    %v655 = vadd.f32 %v654, %v526
    %v656 = vadd.f32 %v655, %v528
    %v657 = vrot.slane %v656, 4
    %v658 = vadd.f32 %v656, %v657
    %v659 = vrot.slane %v658, 2
    %v660 = vadd.f32 %v658, %v659
    %v661 = vrot.slane %v660, 1
    %v662 = vadd.f32 %v660, %v661
    %v663 = vmul.f32 %v371, %v371
    %v664 = vmul.f32 %v373, %v373
    %v665 = vmul.f32 %v376, %v376
    %v666 = vmul.f32 %v378, %v378
    %v667 = vmul.f32 %v381, %v381
    %v668 = vmul.f32 %v383, %v383
    %v669 = vmul.f32 %v386, %v386
    %v670 = vmul.f32 %v388, %v388
    %v671 = vmul.f32 %v391, %v391
    %v672 = vmul.f32 %v393, %v393
    %v673 = vmul.f32 %v396, %v396
    %v674 = vmul.f32 %v398, %v398
    %v675 = vmul.f32 %v401, %v401
    %v676 = vmul.f32 %v403, %v403
    %v677 = vmul.f32 %v406, %v406
    %v678 = vmul.f32 %v408, %v408
    %v679 = vmul.f32 %v411, %v411
    %v680 = vmul.f32 %v413, %v413
    %v681 = vmul.f32 %v416, %v416
    %v682 = vmul.f32 %v418, %v418
    %v683 = vmul.f32 %v421, %v421
    %v684 = vmul.f32 %v423, %v423
    %v685 = vmul.f32 %v426, %v426
    %v686 = vmul.f32 %v428, %v428
    %v687 = vmul.f32 %v431, %v431
    %v688 = vmul.f32 %v433, %v433
    %v689 = vmul.f32 %v436, %v436
    %v690 = vmul.f32 %v438, %v438
    %v691 = vmul.f32 %v441, %v441
    %v692 = vmul.f32 %v443, %v443
    %v693 = vmul.f32 %v446, %v446
    %v694 = vmul.f32 %v448, %v448
    %v695 = vmul.f32 %v451, %v451
    %v696 = vmul.f32 %v453, %v453
    %v697 = vmul.f32 %v456, %v456
    %v698 = vmul.f32 %v458, %v458
    %v699 = vmul.f32 %v461, %v461
    %v700 = vmul.f32 %v463, %v463
    %v701 = vmul.f32 %v466, %v466
    %v702 = vmul.f32 %v468, %v468
    %v703 = vmul.f32 %v471, %v471
    %v704 = vmul.f32 %v473, %v473
    %v705 = vmul.f32 %v476, %v476
    %v706 = vmul.f32 %v478, %v478
    %v707 = vmul.f32 %v481, %v481
    %v708 = vmul.f32 %v483, %v483
    %v709 = vmul.f32 %v486, %v486
    %v710 = vmul.f32 %v488, %v488
    %v711 = vmul.f32 %v491, %v491
    %v712 = vmul.f32 %v493, %v493
    %v713 = vmul.f32 %v496, %v496
    %v714 = vmul.f32 %v498, %v498
    %v715 = vmul.f32 %v501, %v501
    %v716 = vmul.f32 %v503, %v503
    %v717 = vmul.f32 %v506, %v506
    %v718 = vmul.f32 %v508, %v508
    %v719 = vmul.f32 %v511, %v511
    %v720 = vmul.f32 %v513, %v513
    %v721 = vmul.f32 %v516, %v516
    %v722 = vmul.f32 %v518, %v518
    %v723 = vmul.f32 %v521, %v521
    %v724 = vmul.f32 %v523, %v523
    %v725 = vmul.f32 %v526, %v526
    %v726 = vmul.f32 %v528, %v528
    %v727 = vadd.f32 %v663, %v664
    %v728 = vadd.f32 %v727, %v665
    %v729 = vadd.f32 %v728, %v666
    %v730 = vadd.f32 %v729, %v667
    %v731 = vadd.f32 %v730, %v668
    %v732 = vadd.f32 %v731, %v669
    %v733 = vadd.f32 %v732, %v670
    %v734 = vadd.f32 %v733, %v671
    %v735 = vadd.f32 %v734, %v672
    %v736 = vadd.f32 %v735, %v673
    %v737 = vadd.f32 %v736, %v674
    %v738 = vadd.f32 %v737, %v675
    %v739 = vadd.f32 %v738, %v676
    %v740 = vadd.f32 %v739, %v677
    %v741 = vadd.f32 %v740, %v678
    %v742 = vadd.f32 %v741, %v679
    %v743 = vadd.f32 %v742, %v680
    %v744 = vadd.f32 %v743, %v681
    %v745 = vadd.f32 %v744, %v682
    %v746 = vadd.f32 %v745, %v683
    %v747 = vadd.f32 %v746, %v684
    %v748 = vadd.f32 %v747, %v685
    %v749 = vadd.f32 %v748, %v686
    %v750 = vadd.f32 %v749, %v687
    %v751 = vadd.f32 %v750, %v688
    %v752 = vadd.f32 %v751, %v689
    %v753 = vadd.f32 %v752, %v690
    %v754 = vadd.f32 %v753, %v691
    %v755 = vadd.f32 %v754, %v692
    %v756 = vadd.f32 %v755, %v693
    %v757 = vadd.f32 %v756, %v694
    %v758 = vadd.f32 %v757, %v695
    %v759 = vadd.f32 %v758, %v696
    %v760 = vadd.f32 %v759, %v697
    %v761 = vadd.f32 %v760, %v698
    %v762 = vadd.f32 %v761, %v699
    %v763 = vadd.f32 %v762, %v700
    %v764 = vadd.f32 %v763, %v701
    %v765 = vadd.f32 %v764, %v702
    %v766 = vadd.f32 %v765, %v703
    %v767 = vadd.f32 %v766, %v704
    %v768 = vadd.f32 %v767, %v705
    %v769 = vadd.f32 %v768, %v706
    %v770 = vadd.f32 %v769, %v707
    %v771 = vadd.f32 %v770, %v708
    %v772 = vadd.f32 %v771, %v709
    %v773 = vadd.f32 %v772, %v710
    %v774 = vadd.f32 %v773, %v711
    %v775 = vadd.f32 %v774, %v712
    %v776 = vadd.f32 %v775, %v713
    %v777 = vadd.f32 %v776, %v714
    %v778 = vadd.f32 %v777, %v715
    %v779 = vadd.f32 %v778, %v716
    %v780 = vadd.f32 %v779, %v717
    %v781 = vadd.f32 %v780, %v718
    %v782 = vadd.f32 %v781, %v719
    %v783 = vadd.f32 %v782, %v720
    %v784 = vadd.f32 %v783, %v721
    %v785 = vadd.f32 %v784, %v722
    %v786 = vadd.f32 %v785, %v723
    %v787 = vadd.f32 %v786, %v724
    %v788 = vadd.f32 %v787, %v725
    %v789 = vadd.f32 %v788, %v726
    %v790 = vrot.slane %v789, 4
    %v791 = vadd.f32 %v789, %v790
    %v792 = vrot.slane %v791, 2
    %v793 = vadd.f32 %v791, %v792
    %v794 = vrot.slane %v793, 1
    %v795 = vadd.f32 %v793, %v794
    %v796 = vlaneseq
    %v797 = vshrl.u32 %v796, 7
    %vm798 = vcmp.eq.s32.totalorder %v797, 0
    %vm799 = vcmp.eq.s32.totalorder %v797, 1
    %v800 = vsel %vm799, %v795, 0.0
    %v801 = vsel %vm798, %v662, %v800
    %802 = vst [vmem:[#allocation4] sm:$0xff] %v801
    // Predicated region
    $region10: #{tpu_custom_call.1} parent=1 // pred_check
      _
    $region11: #{tpu_custom_call.1} parent=1 // pred_check_branch
      %804 = sbr.rel (0) target = $region13
    $region12: #{tpu_custom_call.1} parent=1 // pred_region
      %806 = vsyncadd [#allocation3], 0
      %s807 = sshll.u32 [#allocation2], 4
      %s808 = int_to_ptr.vmem [resolvable:$true] %s807
      %s809 = sshll.u32 %s2, 4
      %s810 = int_to_ptr.hbm [resolvable:$true] %s809
      %815 = dma.vmem_to_hbm [thread:$0]  %s808, 8192, %s810, [#allocation3], 128, 128, 8
    $region13: #{tpu_custom_call.1} parent=1 // pred_fallthru
      _
    // Predicated region
    $region14: #{tpu_custom_call.1} parent=1 // pred_check
      _
    $region15: #{tpu_custom_call.1} parent=1 // pred_check_branch
      %817 = sbr.rel (0) target = $region17
    $region16: #{tpu_custom_call.1} parent=1 // pred_region
      %819 = vsyncadd [#allocation5], 0
      %s821 = sshll.u32 [#allocation4], 4
      %s822 = int_to_ptr.vmem [resolvable:$true] %s821
      %s823 = sshll.u32 %s3, 4
      %s824 = int_to_ptr.hbm [resolvable:$true] %s823
      %826 = dma.vmem_to_hbm [thread:$0]  %s822, 128, %s824, [#allocation5]
    $region17: #{tpu_custom_call.1} parent=1 // pred_fallthru
      _
    // Predicated region
    $region18: #{tpu_custom_call.1} parent=1 // pred_check
      _
    $region19: #{tpu_custom_call.1} parent=1 // pred_check_branch
      %828 = sbr.rel (0) target = $region21
    $region20: #{tpu_custom_call.1} parent=1 // pred_region
      %830 = dma.done [#allocation3], 8192
    $region21: #{tpu_custom_call.1} parent=1 // pred_fallthru
      _
    // Predicated region
    $region22: #{tpu_custom_call.1} parent=1 // pred_check
      _
    $region23: #{tpu_custom_call.1} parent=1 // pred_check_branch
      %832 = sbr.rel (0) target = $region25
    $region24: #{tpu_custom_call.1} parent=1 // pred_region
      %834 = dma.done [#allocation5], 128
    $region25: #{tpu_custom_call.1} parent=1 // pred_fallthru
      _
    %835 = vsyncpa [#allocation3], 1
    %836 = vsyncpa [#allocation5], 1

</llo_original>
